<compile_context>
chip_gen: v7x
topology: tpu7x:2x2x1
jax: 0.10.0
libtpu: 0.0.40
codegen_flags: <defaults>
</compile_context>

<pallas_src>
import functools

import jax
import jax.numpy as jnp
from jax.experimental import pallas as pl
from jax.experimental.pallas import tpu as pltpu


def _round_up(x, m):
    return ((x + m - 1) // m) * m


def _tpu_kind():
    try:
        return jax.devices()[0].device_kind.lower()
    except Exception:
        return ""


# ---------------------------------------------------------------------------
# Pass 1: online logsumexp stats + loss. grid = (num_m, num_v); V is the inner
# "arbitrary" (reduction) axis; stats live in VMEM scratch across V tiles.
# ---------------------------------------------------------------------------
def _stats_loss_kernel(mask_id, vocab, tile_v, v_padded,
                       hid_ref, w_ref, tgt_ref, tlog_ref,
                       loss_ref, lse_ref, m_s, s_s):
    j = pl.program_id(1)

    @pl.when(j == 0)
    def _init():
        m_s[...] = jnp.full(m_s.shape, -jnp.inf, dtype=m_s.dtype)
        s_s[...] = jnp.zeros(s_s.shape, dtype=s_s.dtype)

    # [TM, TV] logits: bf16 x bf16 MXU matmul with f32 accumulation.
    logits = jnp.dot(hid_ref[...], w_ref[...], preferred_element_type=jnp.float32)

    if v_padded != vocab:  # static: mask padded vocab columns only if V was padded
        col = jax.lax.broadcasted_iota(jnp.int32, logits.shape, 1) + j * tile_v
        logits = jnp.where(col < vocab, logits, -1e30)

    # Online max / sum-of-exp update (flash-softmax style).
    m_prev = m_s[...]
    m_new = jnp.maximum(m_prev, jnp.max(logits, axis=-1, keepdims=True))
    alpha = jnp.exp(m_prev - m_new)
    # TODO(synk): a bf16 exp here (~2x EUP on v6e/v7x) is possible but trades
    # loss accuracy; kept f32 to match the reference tolerances on all gens.
    s_s[...] = alpha * s_s[...] + jnp.sum(jnp.exp(logits - m_new), axis=-1,
                                          keepdims=True)
    m_s[...] = m_new

    @pl.when(j == pl.num_programs(1) - 1)
    def _finalize():
        lse = m_s[...] + jnp.log(s_s[...])
        lse_ref[...] = lse
        loss = lse - tlog_ref[...]            # == -log softmax[target]
        # loss.masked_fill(target == mask_id, 0.0); padded rows carry mask_id.
        loss_ref[...] = jnp.where(tgt_ref[...] == mask_id,
                                  jnp.zeros_like(loss), loss)


# ---------------------------------------------------------------------------
# Pass 2: normalized softmax writeback. Fully parallel grid; normalization is
# folded into the exp via the precomputed logsumexp (no [TM, TV] divide).
# ---------------------------------------------------------------------------
def _softmax_kernel(hid_ref, w_ref, lse_ref, soft_ref):
    logits = jnp.dot(hid_ref[...], w_ref[...], preferred_element_type=jnp.float32)
    soft_ref[...] = jnp.exp(logits - lse_ref[...]).astype(soft_ref.dtype)


def lm_loss_pallas(hidden, lm_head, targets, mask_id, *, vocab=None,
                   tile_m=512, tile_v=2048, soft_dtype=jnp.bfloat16):
    """hidden [N, D], lm_head [D, Vw] (bf16, may be pre-padded), targets [N] int32
       -> (loss [N] f32, softmax [N, V] soft_dtype), V = true vocab size."""
    N, D = hidden.shape
    Dw, Vw = lm_head.shape
    assert Dw == D
    V = int(Vw if vocab is None else vocab)
    assert V <= Vw

    kind = _tpu_kind()
    is_v7 = ("v7" in kind) or ("tpu7" in kind)
    # v7x has 64 MiB VMEM/TC (vs 128 MiB on v5e/v6e): smaller V tiles + lower cap.
    gen_tile_v_cap = 4096 if is_v7 else 8192
    vmem_cap = (48 << 20) if is_v7 else (96 << 20)

    # --- tile selection + padding (no divisibility requirement on N / V) ---
    tile_m = _round_up(max(16, min(tile_m, _round_up(N, 16))), 16)
    n_pad = _round_up(N, tile_m)
    if is_v7:
        # Ensure >= 2 M tiles so the "parallel" M axis shards across both
        # TensorCores in pass 1 (pass 2 already has two parallel axes).
        while n_pad // tile_m < 2 and tile_m > 16:
            tile_m = max(16, _round_up(tile_m // 2, 16))
            n_pad = _round_up(N, tile_m)
    num_m = n_pad // tile_m

    tile_v = _round_up(max(128, min(tile_v, gen_tile_v_cap, _round_up(Vw, 128))), 128)
    v_pad = _round_up(Vw, tile_v)
    num_v = v_pad // tile_v

    # bf16 operands (f32 MXU accumulation). The head is expected pre-cast and
    # pre-padded by the caller; pad/cast here only as a fallback.
    hid = hidden.astype(jnp.bfloat16)
    w = lm_head if lm_head.dtype == jnp.bfloat16 else lm_head.astype(jnp.bfloat16)
    tgt = targets.reshape(-1).astype(jnp.int32)
    if n_pad != N:
        hid = jnp.pad(hid, ((0, n_pad - N), (0, 0)))
        tgt = jnp.pad(tgt, (0, n_pad - N), constant_values=mask_id)
    if v_pad != Vw:
        w = jnp.pad(w, ((0, 0), (0, v_pad - Vw)))
    tgt2d = tgt.reshape(n_pad, 1)

    # Target-logit gather hoisted out of the kernel (N*D flops in plain JAX):
    # removes the per-V-tile [TM, TV] int-compare + select + lane reduce.
    w_tgt = jnp.take(w, tgt, axis=1)                                  # [D, n_pad]
    tlog = jnp.einsum("nd,dn->n", hid.astype(jnp.float32),
                      w_tgt.astype(jnp.float32)).reshape(n_pad, 1)

    # Explicit VMEM budget: double-buffered pipelined tiles plus the Mosaic-
    # materialized [TM, TV] f32 temporaries (logits / exp result / mask),
    # capped per generation instead of assuming 64 MiB everywhere.
    soft_bytes = jnp.dtype(soft_dtype).itemsize
    buf_bytes = (
        2 * tile_m * D * 2                       # hidden (bf16)
        + 2 * D * tile_v * 2                     # weight (bf16)
        + 2 * tile_m * 4 * 4                     # targets / tgt-logit / loss / lse
        + 2 * tile_m * tile_v * soft_bytes       # pass-2 softmax output
        + 2 * tile_m * 4                         # stats scratch (m, s)
    )
    tmp_bytes = 3 * tile_m * tile_v * 4
    vmem_limit = int(min(max(buf_bytes + tmp_bytes + (2 << 20), 4 << 20), vmem_cap))

    # ---- pass 1: online logsumexp stats + loss (V is the reduction axis) ----
    stats_kernel = functools.partial(_stats_loss_kernel, mask_id, V, tile_v, v_pad)
    loss2d, lse2d = pl.pallas_call(
        stats_kernel,
        out_shape=(
            jax.ShapeDtypeStruct((n_pad, 1), jnp.float32),
            jax.ShapeDtypeStruct((n_pad, 1), jnp.float32),
        ),
        grid_spec=pltpu.PrefetchScalarGridSpec(
            num_scalar_prefetch=0,
            grid=(num_m, num_v),
            in_specs=[
                pl.BlockSpec((tile_m, D), lambda i, j: (i, 0)),
                pl.BlockSpec((D, tile_v), lambda i, j: (0, j)),
                pl.BlockSpec((tile_m, 1), lambda i, j: (i, 0)),
                pl.BlockSpec((tile_m, 1), lambda i, j: (i, 0)),
            ],
            out_specs=[
                # TODO(synk): (tile_m, 1) blocks are not lane-dense (masked
                # partial stores) but their traffic (N*4 B) is negligible next
                # to the [N, V] softmax writeback.
                pl.BlockSpec((tile_m, 1), lambda i, j: (i, 0)),
                pl.BlockSpec((tile_m, 1), lambda i, j: (i, 0)),
            ],
            scratch_shapes=[
                pltpu.VMEM((tile_m, 1), jnp.float32),   # running max
                pltpu.VMEM((tile_m, 1), jnp.float32),   # running sum(exp)
            ],
        ),
        compiler_params=pltpu.CompilerParams(
            dimension_semantics=("parallel", "arbitrary"),
            vmem_limit_bytes=vmem_limit,
        ),
    )(hid, w, tgt2d, tlog)

    # ---- pass 2: normalized softmax writeback ----
    # V is the OUTER grid axis, M the inner one: the (D, tile_v) weight block
    # index is constant across the inner loop so the LM head is fetched from
    # HBM exactly once; only the small [tile_m, D] hidden tile re-streams.
    soft = pl.pallas_call(
        _softmax_kernel,
        out_shape=jax.ShapeDtypeStruct((n_pad, v_pad), soft_dtype),
        grid_spec=pltpu.PrefetchScalarGridSpec(
            num_scalar_prefetch=0,
            grid=(num_v, num_m),
            in_specs=[
                pl.BlockSpec((tile_m, D), lambda j, i: (i, 0)),
                pl.BlockSpec((D, tile_v), lambda j, i: (0, j)),
                pl.BlockSpec((tile_m, 1), lambda j, i: (i, 0)),
            ],
            out_specs=pl.BlockSpec((tile_m, tile_v), lambda j, i: (i, j)),
        ),
        compiler_params=pltpu.CompilerParams(
            dimension_semantics=("parallel", "parallel"),
            vmem_limit_bytes=vmem_limit,
        ),
    )(hid, w, lse2d)

    return loss2d[:N, 0], soft[:N, :V]


class Decoder1Pallas:
    """Pallas re-implementation of Decoder1.forward's loss/softmax hot path.

    The pretrained T5ForConditionalGeneration (codet5-small) cannot be
    reproduced here; it is replaced by a deterministic synthetic stand-in
    (token embedding + masked-mean encoder context + LM head).
    """

    def __init__(self, mask_id, vocab=512, d_model=32, seed=0):
        self.mask_id = int(mask_id)
        self.vocab = vocab
        self.d_model = d_model
        k_emb, k_head = jax.random.split(jax.random.PRNGKey(seed))
        self.embedding = jax.random.normal(k_emb, (vocab, d_model), jnp.float32) * 0.02
        # LM head pre-cast to bf16 (native MXU input dtype) and pre-padded to a
        # multiple of 128 ONCE at construction — no per-call pad copy of the head.
        # TODO(synk): on v7x an fp8 head would halve head DMA again; needs
        # accuracy validation so it is not applied here.
        head = jax.random.normal(k_head, (d_model, vocab), jnp.float32) * 0.02
        v_pad = _round_up(vocab, 128)
        if v_pad != vocab:
            head = jnp.pad(head, ((0, 0), (0, v_pad - vocab)))
        self.lm_head = head.astype(jnp.bfloat16)

    def __call__(self, inputids, outputids):
        # --- glue (plain JAX), mirrors the PyTorch slicing / masking ---
        decoderinputid = outputids[:, :-1].astype(jnp.int32)
        decoderoutputid = outputids[:, 1:].astype(jnp.int32)
        inputmask = (inputids != self.mask_id)            # encoder attention mask
        # TODO(synk): decoder_attention_mask only affects the internal T5
        # attention stack, which the synthetic stand-in does not reproduce.

        B, T = decoderinputid.shape
        dec_h = self.embedding[decoderinputid]                    # [B, T, D]
        enc_e = self.embedding[inputids.astype(jnp.int32)]        # [B, S, D]
        w = inputmask.astype(jnp.float32)[..., None]              # [B, S, 1]
        ctx = (enc_e * w).sum(axis=1) / jnp.maximum(w.sum(axis=1), 1.0)  # [B, D]
        hidden = (dec_h + ctx[:, None, :]).reshape(B * T, self.d_model)

        # --- hot path: fused LM-head matmul + softmax + gather + -log + mask ---
        # tile_v=256 exercises the V-tiled online-logsumexp path at the demo
        # vocab (512); use 2048-4096 (v7x) / up to 8192 (v5e/v6e) for a 32k head.
        loss_flat, soft_flat = lm_loss_pallas(
            hidden, self.lm_head, decoderoutputid.reshape(-1), self.mask_id,
            vocab=self.vocab, tile_m=512, tile_v=256, soft_dtype=jnp.bfloat16,
        )
        return loss_flat.reshape(B, T), soft_flat.reshape(B, T, self.vocab)


def _reference(model, inputids, outputids):
    """Pure-JAX reference for the same synthetic model (bf16 LM-head matmul is
    emulated: bf16-rounded operands, f32 accumulation)."""
    decoderinputid = outputids[:, :-1].astype(jnp.int32)
    decoderoutputid = outputids[:, 1:].astype(jnp.int32)
    inputmask = (inputids != model.mask_id)
    dec_h = model.embedding[decoderinputid]
    enc_e = model.embedding[inputids.astype(jnp.int32)]
    w = inputmask.astype(jnp.float32)[..., None]
    ctx = (enc_e * w).sum(axis=1) / jnp.maximum(w.sum(axis=1), 1.0)
    hidden = dec_h + ctx[:, None, :]
    head = model.lm_head[:, :model.vocab].astype(jnp.float32)
    logits = jnp.einsum("btd,dv->btv",
                        hidden.astype(jnp.bfloat16).astype(jnp.float32), head)
    soft = jax.nn.softmax(logits, axis=-1)
    p = jnp.take_along_axis(soft, decoderoutputid[..., None], axis=-1)[..., 0]
    loss = -jnp.log(p)
    loss = jnp.where(decoderoutputid == model.mask_id, 0.0, loss)
    return loss, soft


if __name__ == "__main__":
    B, S_enc, T_dec, V = 2, 8, 8, 512
    MASK_ID = 0

    key = jax.random.PRNGKey(0)
    k_in, k_out = jax.random.split(key)
    inputids = jax.random.randint(k_in, (B, S_enc), 0, V, dtype=jnp.int32)
    outputids = jax.random.randint(k_out, (B, T_dec + 1), 0, V, dtype=jnp.int32)
    # sprinkle some mask tokens to exercise the mask-fill path
    inputids = inputids.at[:, -2:].set(MASK_ID)
    outputids = outputids.at[:, -1].set(MASK_ID)

    model = Decoder1Pallas(mask_id=MASK_ID, vocab=V, d_model=32, seed=0)

    loss, res_softmax = model(inputids, outputids)
    jax.block_until_ready((loss, res_softmax))

    ref_loss, ref_soft = _reference(model, inputids, outputids)
    assert loss.shape == (B, T_dec) and res_softmax.shape == (B, T_dec, V)
    assert jnp.allclose(loss, ref_loss, atol=1e-4, rtol=1e-4), (
        float(jnp.max(jnp.abs(loss - ref_loss))))
    # softmax output is bf16 (halves the dominant [N, V] HBM writeback);
    # compare at bf16-level tolerance.
    assert jnp.allclose(res_softmax.astype(jnp.float32), ref_soft,
                        atol=2e-3, rtol=2e-2), (
        float(jnp.max(jnp.abs(res_softmax.astype(jnp.float32) - ref_soft))))

    print("KERNEL_OK")
</pallas_src>

<mosaic_0001>
module attributes {stable_mosaic.version = 11 : i64} {
  func.func @_stats_loss_kernel(%arg0: i32, %arg1: i32, %arg2: memref<16x32xbf16, #tpu.memory_space<vmem>>, %arg3: memref<32x256xbf16, #tpu.memory_space<vmem>>, %arg4: memref<16x1xi32, #tpu.memory_space<vmem>>, %arg5: memref<16x1xf32, #tpu.memory_space<vmem>>, %arg6: memref<16x1xf32, #tpu.memory_space<vmem>>, %arg7: memref<16x1xf32, #tpu.memory_space<vmem>>, %arg8: memref<16x1xf32, #tpu.memory_space<vmem>>, %arg9: memref<16x1xf32, #tpu.memory_space<vmem>>) attributes {dimension_semantics = [#tpu.dimension_semantics<parallel>, #tpu.dimension_semantics<arbitrary>], iteration_bounds = array<i64: 1, 2>, scalar_prefetch = 0 : i64, scratch_operands = 2 : i64, tpu.core_type = #tpu.core_type<tc>, window_params = [{transform_indices = @transform_0, window_bounds = array<i64: 16, 32>}, {transform_indices = @transform_1, window_bounds = array<i64: 32, 256>}, {transform_indices = @transform_2, window_bounds = array<i64: 16, 1>}, {transform_indices = @transform_3, window_bounds = array<i64: 16, 1>}, {transform_indices = @transform_4, window_bounds = array<i64: 16, 1>}, {transform_indices = @transform_5, window_bounds = array<i64: 16, 1>}]} {
    %c0_i32 = arith.constant 0 : i32
    %0 = arith.cmpi eq, %arg1, %c0_i32 : i32
    %1 = arith.extui %0 : i1 to i32
    %c0_i32_0 = arith.constant 0 : i32
    %2 = arith.cmpi ne, %1, %c0_i32_0 : i32
    scf.if %2 {
      %cst_15 = arith.constant 0xFF800000 : f32
      %25 = vector.broadcast %cst_15 : f32 to vector<16x1xf32>
      %c0_16 = arith.constant 0 : index
      %c0_17 = arith.constant 0 : index
      %26 = vector.load %arg8[%c0_16, %c0_17] : memref<16x1xf32, #tpu.memory_space<vmem>>, vector<16x1xf32>
      tpu.vector_store %arg8[%c0_16, %c0_17], %25 {strides = array<i32>} : memref<16x1xf32, #tpu.memory_space<vmem>>, vector<16x1xf32>,
      %cst_18 = arith.constant 0.000000e+00 : f32
      %27 = vector.broadcast %cst_18 : f32 to vector<16x1xf32>
      %c0_19 = arith.constant 0 : index
      %c0_20 = arith.constant 0 : index
      %28 = vector.load %arg9[%c0_19, %c0_20] : memref<16x1xf32, #tpu.memory_space<vmem>>, vector<16x1xf32>
      tpu.vector_store %arg9[%c0_19, %c0_20], %27 {strides = array<i32>} : memref<16x1xf32, #tpu.memory_space<vmem>>, vector<16x1xf32>,
    } else {
    }
    %c0 = arith.constant 0 : index
    %c0_1 = arith.constant 0 : index
    %3 = vector.load %arg2[%c0, %c0_1] : memref<16x32xbf16, #tpu.memory_space<vmem>>, vector<16x32xbf16>
    %c0_2 = arith.constant 0 : index
    %c0_3 = arith.constant 0 : index
    %4 = vector.load %arg3[%c0_2, %c0_3] : memref<32x256xbf16, #tpu.memory_space<vmem>>, vector<32x256xbf16>
    %cst = arith.constant dense<0.000000e+00> : vector<16x256xf32>
    %5 = tpu.matmul %3, %4, %cst {dimension_numbers = #tpu.dot_dimension_numbers<[1], [0], [0], [1], [0, 0, 1, 1], [], []>} : vector<16x32xbf16>, vector<32x256xbf16>, vector<16x256xf32> -> vector<16x256xf32>
    %c0_4 = arith.constant 0 : index
    %c0_5 = arith.constant 0 : index
    %6 = vector.load %arg8[%c0_4, %c0_5] : memref<16x1xf32, #tpu.memory_space<vmem>>, vector<16x1xf32>
    %cst_6 = arith.constant dense<0xFF800000> : vector<16xf32>
    %7 = vector.multi_reduction <maximumf>, %5, %cst_6 [1] : vector<16x256xf32> to vector<16xf32>
    %8 = vector.shape_cast %7 : vector<16xf32> to vector<16x1xf32>
    %9 = arith.maximumf %6, %8 : vector<16x1xf32>
    %10 = arith.subf %6, %9 : vector<16x1xf32>
    %11 = math.exp %10 : vector<16x1xf32>
    %c0_7 = arith.constant 0 : index
    %c0_8 = arith.constant 0 : index
    %12 = vector.load %arg9[%c0_7, %c0_8] : memref<16x1xf32, #tpu.memory_space<vmem>>, vector<16x1xf32>
    %13 = arith.mulf %11, %12 : vector<16x1xf32>
    %14 = vector.broadcast %9 : vector<16x1xf32> to vector<16x256xf32>
    %15 = arith.subf %5, %14 : vector<16x256xf32>
    %16 = math.exp %15 : vector<16x256xf32>
    %cst_9 = arith.constant dense<0.000000e+00> : vector<16xf32>
    %17 = vector.multi_reduction <add>, %16, %cst_9 [1] : vector<16x256xf32> to vector<16xf32>
    %18 = vector.shape_cast %17 : vector<16xf32> to vector<16x1xf32>
    %19 = arith.addf %13, %18 : vector<16x1xf32>
    %c0_10 = arith.constant 0 : index
    %c0_11 = arith.constant 0 : index
    %20 = vector.load %arg9[%c0_10, %c0_11] : memref<16x1xf32, #tpu.memory_space<vmem>>, vector<16x1xf32>
    tpu.vector_store %arg9[%c0_10, %c0_11], %19 {strides = array<i32>} : memref<16x1xf32, #tpu.memory_space<vmem>>, vector<16x1xf32>,
    %c0_12 = arith.constant 0 : index
    %c0_13 = arith.constant 0 : index
    %21 = vector.load %arg8[%c0_12, %c0_13] : memref<16x1xf32, #tpu.memory_space<vmem>>, vector<16x1xf32>
    tpu.vector_store %arg8[%c0_12, %c0_13], %9 {strides = array<i32>} : memref<16x1xf32, #tpu.memory_space<vmem>>, vector<16x1xf32>,
    %c1_i32 = arith.constant 1 : i32
    %22 = arith.cmpi eq, %arg1, %c1_i32 : i32
    %23 = arith.extui %22 : i1 to i32
    %c0_i32_14 = arith.constant 0 : i32
    %24 = arith.cmpi ne, %23, %c0_i32_14 : i32
    scf.if %24 {
      %c0_15 = arith.constant 0 : index
      %c0_16 = arith.constant 0 : index
      %25 = vector.load %arg8[%c0_15, %c0_16] : memref<16x1xf32, #tpu.memory_space<vmem>>, vector<16x1xf32>
      %c0_17 = arith.constant 0 : index
      %c0_18 = arith.constant 0 : index
      %26 = vector.load %arg9[%c0_17, %c0_18] : memref<16x1xf32, #tpu.memory_space<vmem>>, vector<16x1xf32>
      %27 = math.log %26 : vector<16x1xf32>
      %28 = arith.addf %25, %27 : vector<16x1xf32>
      %c0_19 = arith.constant 0 : index
      %c0_20 = arith.constant 0 : index
      %29 = vector.load %arg7[%c0_19, %c0_20] : memref<16x1xf32, #tpu.memory_space<vmem>>, vector<16x1xf32>
      tpu.vector_store %arg7[%c0_19, %c0_20], %28 {strides = array<i32>} : memref<16x1xf32, #tpu.memory_space<vmem>>, vector<16x1xf32>,
      %c0_21 = arith.constant 0 : index
      %c0_22 = arith.constant 0 : index
      %30 = vector.load %arg5[%c0_21, %c0_22] : memref<16x1xf32, #tpu.memory_space<vmem>>, vector<16x1xf32>
      %31 = arith.subf %28, %30 : vector<16x1xf32>
      %c0_23 = arith.constant 0 : index
      %c0_24 = arith.constant 0 : index
      %32 = vector.load %arg4[%c0_23, %c0_24] : memref<16x1xi32, #tpu.memory_space<vmem>>, vector<16x1xi32>
      %c0_i32_25 = arith.constant 0 : i32
      %33 = vector.broadcast %c0_i32_25 : i32 to vector<16x1xi32>
      %34 = arith.cmpi eq, %32, %33 : vector<16x1xi32>
      %cst_26 = arith.constant 0.000000e+00 : f32
      %35 = vector.broadcast %cst_26 : f32 to vector<16x1xf32>
      %36 = arith.select %34, %35, %31 : vector<16x1xi1>, vector<16x1xf32>
      %c0_27 = arith.constant 0 : index
      %c0_28 = arith.constant 0 : index
      %37 = vector.load %arg6[%c0_27, %c0_28] : memref<16x1xf32, #tpu.memory_space<vmem>>, vector<16x1xf32>
      tpu.vector_store %arg6[%c0_27, %c0_28], %36 {strides = array<i32>} : memref<16x1xf32, #tpu.memory_space<vmem>>, vector<16x1xf32>,
    } else {
    }
    return
  }
  func.func @transform_0(%arg0: i32, %arg1: i32) -> (i32, i32) {
    %c0_i32 = arith.constant 0 : i32
    %c0_i32_0 = arith.constant 0 : i32
    return %arg0, %c0_i32 : i32, i32
  }
  func.func @transform_1(%arg0: i32, %arg1: i32) -> (i32, i32) {
    %c0_i32 = arith.constant 0 : i32
    %c0_i32_0 = arith.constant 0 : i32
    return %c0_i32, %arg1 : i32, i32
  }
  func.func @transform_2(%arg0: i32, %arg1: i32) -> (i32, i32) {
    %c0_i32 = arith.constant 0 : i32
    %c0_i32_0 = arith.constant 0 : i32
    return %arg0, %c0_i32 : i32, i32
  }
  func.func @transform_3(%arg0: i32, %arg1: i32) -> (i32, i32) {
    %c0_i32 = arith.constant 0 : i32
    %c0_i32_0 = arith.constant 0 : i32
    return %arg0, %c0_i32 : i32, i32
  }
  func.func @transform_4(%arg0: i32, %arg1: i32) -> (i32, i32) {
    %c0_i32 = arith.constant 0 : i32
    %c0_i32_0 = arith.constant 0 : i32
    return %arg0, %c0_i32 : i32, i32
  }
  func.func @transform_5(%arg0: i32, %arg1: i32) -> (i32, i32) {
    %c0_i32 = arith.constant 0 : i32
    %c0_i32_0 = arith.constant 0 : i32
    return %arg0, %c0_i32 : i32, i32
  }
}

</mosaic_0001>

<llo_original>
// kernel: tpu_custom_call.1
$region0: #{tpu_custom_call.1}
  #allocation0 [shape = 'u32[]', space=smem, size = 0x4, offset = 0x4, fixed_abs, tag = 'smem constant byte address 0x4 - core index']
  #allocation1 [shape = 'u32[144,128]{1,0:T(1,128)}', space=vmem, size = 0x12000, scoped, tag = 'internal scratch']
  #allocation2 [shape = 'f32[16,1]{1,0:T(8,128)}', space=vmem, size = 0x2000, scoped, tag = 'scratch operand']
  #allocation3 [shape = 'f32[16,1]{1,0:T(8,128)}', space=vmem, size = 0x2000, scoped, tag = 'scratch operand']
  %s0 = inlined_call_operand.vmem [shape: bf16[16,32], index: 0, kind: input, shape index: {}]
  %s1 = inlined_call_operand.hbm [shape: bf16[32,512], index: 1, kind: input, shape index: {}]
  %s2 = inlined_call_operand.vmem [shape: s32[16,1], index: 2, kind: input, shape index: {}]
  %s3 = inlined_call_operand.vmem [shape: f32[16,1], index: 3, kind: input, shape index: {}]
  %s4 = inlined_call_operand.vmem [shape: f32[16,1], index: 4, kind: output, shape index: {0}]
  %s5 = inlined_call_operand.vmem [shape: f32[16,1], index: 5, kind: output, shape index: {1}]
  %6 = xla_tuple %s4, %s5
  %s7 = sld [smem:[#allocation0]]
  $region69: #{tpu_custom_call.1} parent=0
    _
  %s9 = ssub.s32 1, %s7
  %s10 = scalar_select 0, %s9, %s7
  $region1: #{tpu_custom_call.1} parent=0
    #allocation4 [shape = 'u8[32768]{0}', space=vmem, size = 0x8000, scoped, tag = 'input window, operand 1']
    #allocation5 [shape = 's32[2]{0}', space=sflag, size = 0x8, scoped, tag = 'scoped memory for tpu_custom_call.1']
    %11 = vsyncpa [#allocation5], 0
    %s12 = scalar_lea.sflag [#allocation5], 1
    %13 = vsyncpa %s12, 0
    loop: start=0, step=1, limit=4
    $region2: #{tpu_custom_call.1} parent=1 // loop_pre_header
      _
    $region3: #{tpu_custom_call.1} parent=1 // loop_header
      %s15 = sphi 0, %s19
      %p16 = scmp.ge.s32.totalorder %s15, 4
      %s22 = sphi 0, %s34
      %s23 = sphi 0, %s30
      %s24 = sphi 0, %s22
      %s25 = sphi 0, %s23
      %s26 = sphi 0, %s24
      %s27 = sphi 0, %s25
      %s37 = sphi 0, %s39
      %s40 = sphi 0, %s37
      %s41 = sphi 0, %s40
      %s57 = sphi 0, %s41
      %s63 = sphi 0, %s65
      %s66 = sphi 0, %s63
      %s67 = sphi 0, %s66
      %s83 = sphi 0, %s67
      %s89 = sphi 0, %s91
      %s92 = sphi 0, %s89
      %s93 = sphi 0, %s92
      %s109 = sphi 0, %s93
      %s115 = sphi 0, %s117
      %s118 = sphi 0, %s115
      %s119 = sphi 0, %s118
      %s135 = sphi 0, %s119
      %s141 = sphi 0, %s143
      %s144 = sphi 0, %s141
      %s145 = sphi 0, %s144
      %s161 = sphi 0, %s145
      %s167 = sphi 0, %s169
      %s170 = sphi 0, %s167
      %s171 = sphi 0, %s170
      %s187 = sphi 0, %s171
    $region4: #{tpu_custom_call.1} parent=1 // loop_header_branch
      %18 = sbr.rel (%p16) target = $region8
    $region5: #{tpu_custom_call.1} parent=1 // loop_body
      %s20 = ssub.s32 %s15, 1
      %s21 = ssub.s32 %s15, 2
      %s28 = sadd.s32 1, %s23
      %p29 = scmp.ge.s32.totalorder %s28, 2
      %s30 = scalar_select %p29, 0, %s28
      %s31 = sadd.s32 1, %s22
      %s32 = scalar_select %p29, %s31, %s22
      %p33 = scmp.ge.s32.totalorder %s32, 1
      %s34 = scalar_select %p33, 0, %s32
      %s35 = ssub.s32 %s22, %s34
      %p36 = scmp.eq.s32.totalorder %s35, 0
      %s38 = sadd.s32 %s37, 1
      %s39 = scalar_select %p36, %s37, %s38
      %p42 = pneg %p36
      %p43 = scmp.eq.s32.totalorder %s15, 1
      %p44 = por %p42, %p43
      %p45 = scmp.ne.s32.totalorder %s37, %s40
      %p46 = scmp.eq.s32.totalorder %s15, 0
      %p47 = por %p45, %p46
      %p48 = scmp.ne.s32.totalorder %s37, %s40
      %p49 = scmp.eq.s32.totalorder %s20, 1
      %p50 = por %p48, %p49
      %p51 = scmp.ne.s32.totalorder %s40, %s41
      %p52 = scmp.eq.s32.totalorder %s20, 0
      %p53 = por %p51, %p52
      %p54 = scmp.ne.s32.totalorder %s40, %s41
      %p55 = scmp.eq.s32.totalorder %s21, 1
      %p56 = por %p54, %p55
      %p58 = scmp.ne.s32.totalorder %s41, %s57
      %p59 = scmp.eq.s32.totalorder %s21, 0
      %p60 = por %p58, %p59
      %s61 = ssub.s32 %s23, %s30
      %p62 = scmp.eq.s32.totalorder %s61, 0
      %s64 = sadd.s32 %s63, 1
      %s65 = scalar_select %p62, %s63, %s64
      %p68 = pneg %p62
      %p69 = scmp.eq.s32.totalorder %s15, 1
      %p70 = por %p68, %p69
      %p71 = scmp.ne.s32.totalorder %s63, %s66
      %p72 = scmp.eq.s32.totalorder %s15, 0
      %p73 = por %p71, %p72
      %p74 = scmp.ne.s32.totalorder %s63, %s66
      %p75 = scmp.eq.s32.totalorder %s20, 1
      %p76 = por %p74, %p75
      %p77 = scmp.ne.s32.totalorder %s66, %s67
      %p78 = scmp.eq.s32.totalorder %s20, 0
      %p79 = por %p77, %p78
      %p80 = scmp.ne.s32.totalorder %s66, %s67
      %p81 = scmp.eq.s32.totalorder %s21, 1
      %p82 = por %p80, %p81
      %p84 = scmp.ne.s32.totalorder %s67, %s83
      %p85 = scmp.eq.s32.totalorder %s21, 0
      %p86 = por %p84, %p85
      %s87 = ssub.s32 %s22, %s34
      %p88 = scmp.eq.s32.totalorder %s87, 0
      %s90 = sadd.s32 %s89, 1
      %s91 = scalar_select %p88, %s89, %s90
      %p94 = pneg %p88
      %p95 = scmp.eq.s32.totalorder %s15, 1
      %p96 = por %p94, %p95
      %p97 = scmp.ne.s32.totalorder %s89, %s92
      %p98 = scmp.eq.s32.totalorder %s15, 0
      %p99 = por %p97, %p98
      %p100 = scmp.ne.s32.totalorder %s89, %s92
      %p101 = scmp.eq.s32.totalorder %s20, 1
      %p102 = por %p100, %p101
      %p103 = scmp.ne.s32.totalorder %s92, %s93
      %p104 = scmp.eq.s32.totalorder %s20, 0
      %p105 = por %p103, %p104
      %p106 = scmp.ne.s32.totalorder %s92, %s93
      %p107 = scmp.eq.s32.totalorder %s21, 1
      %p108 = por %p106, %p107
      %p110 = scmp.ne.s32.totalorder %s93, %s109
      %p111 = scmp.eq.s32.totalorder %s21, 0
      %p112 = por %p110, %p111
      %s113 = ssub.s32 %s22, %s34
      %p114 = scmp.eq.s32.totalorder %s113, 0
      %s116 = sadd.s32 %s115, 1
      %s117 = scalar_select %p114, %s115, %s116
      %p120 = pneg %p114
      %p121 = scmp.eq.s32.totalorder %s15, 1
      %p122 = por %p120, %p121
      %p123 = scmp.ne.s32.totalorder %s115, %s118
      %p124 = scmp.eq.s32.totalorder %s15, 0
      %p125 = por %p123, %p124
      %p126 = scmp.ne.s32.totalorder %s115, %s118
      %p127 = scmp.eq.s32.totalorder %s20, 1
      %p128 = por %p126, %p127
      %p129 = scmp.ne.s32.totalorder %s118, %s119
      %p130 = scmp.eq.s32.totalorder %s20, 0
      %p131 = por %p129, %p130
      %p132 = scmp.ne.s32.totalorder %s118, %s119
      %p133 = scmp.eq.s32.totalorder %s21, 1
      %p134 = por %p132, %p133
      %p136 = scmp.ne.s32.totalorder %s119, %s135
      %p137 = scmp.eq.s32.totalorder %s21, 0
      %p138 = por %p136, %p137
      %s139 = ssub.s32 %s22, %s34
      %p140 = scmp.eq.s32.totalorder %s139, 0
      %s142 = sadd.s32 %s141, 1
      %s143 = scalar_select %p140, %s141, %s142
      %p146 = pneg %p140
      %p147 = scmp.eq.s32.totalorder %s15, 1
      %p148 = por %p146, %p147
      %p149 = scmp.ne.s32.totalorder %s141, %s144
      %p150 = scmp.eq.s32.totalorder %s15, 0
      %p151 = por %p149, %p150
      %p152 = scmp.ne.s32.totalorder %s141, %s144
      %p153 = scmp.eq.s32.totalorder %s20, 1
      %p154 = por %p152, %p153
      %p155 = scmp.ne.s32.totalorder %s144, %s145
      %p156 = scmp.eq.s32.totalorder %s20, 0
      %p157 = por %p155, %p156
      %p158 = scmp.ne.s32.totalorder %s144, %s145
      %p159 = scmp.eq.s32.totalorder %s21, 1
      %p160 = por %p158, %p159
      %p162 = scmp.ne.s32.totalorder %s145, %s161
      %p163 = scmp.eq.s32.totalorder %s21, 0
      %p164 = por %p162, %p163
      %s165 = ssub.s32 %s22, %s34
      %p166 = scmp.eq.s32.totalorder %s165, 0
      %s168 = sadd.s32 %s167, 1
      %s169 = scalar_select %p166, %s167, %s168
      %p172 = pneg %p166
      %p173 = scmp.eq.s32.totalorder %s15, 1
      %p174 = por %p172, %p173
      %p175 = scmp.ne.s32.totalorder %s167, %s170
      %p176 = scmp.eq.s32.totalorder %s15, 0
      %p177 = por %p175, %p176
      %p178 = scmp.ne.s32.totalorder %s167, %s170
      %p179 = scmp.eq.s32.totalorder %s20, 1
      %p180 = por %p178, %p179
      %p181 = scmp.ne.s32.totalorder %s170, %s171
      %p182 = scmp.eq.s32.totalorder %s20, 0
      %p183 = por %p181, %p182
      %p184 = scmp.ne.s32.totalorder %s170, %s171
      %p185 = scmp.eq.s32.totalorder %s21, 1
      %p186 = por %p184, %p185
      %p188 = scmp.ne.s32.totalorder %s171, %s187
      %p189 = scmp.eq.s32.totalorder %s21, 0
      %p190 = por %p188, %p189
      %p191 = scmp.le.s32.totalorder 1, %s15
      %p192 = scmp.lt.s32.totalorder %s15, 3
      %p193 = pnand %p191, %p192
      %p194 = pneg %p193
      // Predicated region
      $region9: #{tpu_custom_call.1} parent=5 // pred_check
        _
      $region10: #{tpu_custom_call.1} parent=5 // pred_check_branch
        %196 = sbr.rel (%p193) target = $region12
      $region11: #{tpu_custom_call.1} parent=5 // pred_region
        %s197 = ssub.s32 %s15, 1
        // Predicated region
        $region13: #{tpu_custom_call.1} parent=11 // pred_check
          %p198 = pneg %p53
        $region14: #{tpu_custom_call.1} parent=11 // pred_check_branch
          %200 = sbr.rel (%p198) target = $region16
        $region15: #{tpu_custom_call.1} parent=11 // pred_region
          %s201 = smul.u32 2, %s24
          %p202 = scmp.lt.s32.totalorder %s201, 1
          %s203 = scalar_select %p202, %s201, 1
          %s204 = smul.addr %s203, 4
          %s205 = scalar_lea.vmem %s0, %s204
          %s206 = smul.u32 2, %s24
        $region16: #{tpu_custom_call.1} parent=11 // pred_fallthru
          _
        // Predicated region
        $region17: #{tpu_custom_call.1} parent=11 // pred_check
          %p207 = pneg %p105
        $region18: #{tpu_custom_call.1} parent=11 // pred_check_branch
          %209 = sbr.rel (%p207) target = $region20
        $region19: #{tpu_custom_call.1} parent=11 // pred_region
          %s210 = smul.u32 2, %s24
          %p211 = scmp.lt.s32.totalorder %s210, 1
          %s212 = scalar_select %p211, %s210, 1
          %s213 = smul.addr %s212, 8
          %s214 = scalar_lea.vmem %s2, %s213
          %s215 = smul.u32 2, %s24
        $region20: #{tpu_custom_call.1} parent=11 // pred_fallthru
          _
        // Predicated region
        $region21: #{tpu_custom_call.1} parent=11 // pred_check
          %p216 = pneg %p131
        $region22: #{tpu_custom_call.1} parent=11 // pred_check_branch
          %218 = sbr.rel (%p216) target = $region24
        $region23: #{tpu_custom_call.1} parent=11 // pred_region
          %s219 = smul.u32 2, %s24
          %p220 = scmp.lt.s32.totalorder %s219, 1
          %s221 = scalar_select %p220, %s219, 1
          %s222 = smul.addr %s221, 8
          %s223 = scalar_lea.vmem %s3, %s222
          %s224 = smul.u32 2, %s24
        $region24: #{tpu_custom_call.1} parent=11 // pred_fallthru
          _
      $region12: #{tpu_custom_call.1} parent=5 // pred_fallthru
        _
      %p225 = scmp.lt.s32.totalorder %s15, 2
      // Predicated region
      $region25: #{tpu_custom_call.1} parent=5 // pred_check
        %p226 = pneg %p225
      $region26: #{tpu_custom_call.1} parent=5 // pred_check_branch
        %228 = sbr.rel (%p226) target = $region28
      $region27: #{tpu_custom_call.1} parent=5 // pred_region
        // Predicated region
        $region29: #{tpu_custom_call.1} parent=27 // pred_check
          %p229 = pneg %p73
        $region30: #{tpu_custom_call.1} parent=27 // pred_check_branch
          %231 = sbr.rel (%p229) target = $region32
        $region31: #{tpu_custom_call.1} parent=27 // pred_region
          %s232 = sand.u32 %s63, 1
          %s233 = scalar_lea.sflag [#allocation5], %s232
          %s234 = sand.u32 %s63, 1
          %s235 = smul.addr %s234, 32
          %s236 = scalar_lea.vmem [#allocation4], %s235
          %s237 = smul.u32 2, %s23
          %s239 = ssub.s32 512, 512
          %240 = vsyncadd %s233, %s239
          %s241 = smul.addr %s237, 64
          %s242 = scalar_lea.hbm %s1, %s241
          %s243 = sshll.u32 %s236, 4
          %s244 = int_to_ptr.vmem [resolvable:$true] %s243
          %249 = dma.hbm_to_vmem [thread:$0]  %s242, 512, %s244, %s233, 256, 128, 8
        $region32: #{tpu_custom_call.1} parent=27 // pred_fallthru
          _
      $region28: #{tpu_custom_call.1} parent=5 // pred_fallthru
        _
      %p250 = scmp.le.s32.totalorder 1, %s15
      %p251 = scmp.lt.s32.totalorder %s15, 3
      %p252 = pnand %p250, %p251
      %p253 = pneg %p252
      // Predicated region
      $region33: #{tpu_custom_call.1} parent=5 // pred_check
        _
      $region34: #{tpu_custom_call.1} parent=5 // pred_check_branch
        %255 = sbr.rel (%p252) target = $region36
      $region35: #{tpu_custom_call.1} parent=5 // pred_region
        %s256 = ssub.s32 %s15, 1
        %s257 = sand.u32 %s66, 1
        %s258 = scalar_lea.sflag [#allocation5], %s257
        %s259 = sand.u32 %s66, 1
        %s260 = smul.addr %s259, 32
        %s261 = scalar_lea.vmem [#allocation4], %s260
        // Predicated region
        $region37: #{tpu_custom_call.1} parent=35 // pred_check
          %p262 = pneg %p79
        $region38: #{tpu_custom_call.1} parent=35 // pred_check_branch
          %264 = sbr.rel (%p262) target = $region40
        $region39: #{tpu_custom_call.1} parent=35 // pred_region
          %265 = dma.done %s258, 512
        $region40: #{tpu_custom_call.1} parent=35 // pred_fallthru
          _
        %s266 = smul.u32 2, %s24
        %p267 = scmp.lt.s32.totalorder %s266, 1
        %s268 = scalar_select %p267, %s266, 1
        %s269 = smul.addr %s268, 4
        %s270 = scalar_lea.vmem %s0, %s269
        %p271 = pneg %p53
        %p272 = pneg %p50
        %s273 = sand.u32 %s66, 1
        %s274 = scalar_lea.sflag [#allocation5], %s273
        %s275 = sand.u32 %s66, 1
        %s276 = smul.addr %s275, 32
        %s277 = scalar_lea.vmem [#allocation4], %s276
        %p278 = pneg %p79
        %p279 = pneg %p76
        %s280 = smul.u32 2, %s24
        %p281 = scmp.lt.s32.totalorder %s280, 1
        %s282 = scalar_select %p281, %s280, 1
        %s283 = smul.addr %s282, 8
        %s284 = scalar_lea.vmem %s2, %s283
        %p285 = pneg %p105
        %p286 = pneg %p102
        %s287 = smul.u32 2, %s24
        %p288 = scmp.lt.s32.totalorder %s287, 1
        %s289 = scalar_select %p288, %s287, 1
        %s290 = smul.addr %s289, 8
        %s291 = scalar_lea.vmem %s3, %s290
        %p292 = pneg %p131
        %p293 = pneg %p128
        %p294 = pneg %p157
        %p295 = pneg %p154
        %s296 = smul.u32 2, %s24
        %p297 = scmp.lt.s32.totalorder %s296, 1
        %s298 = scalar_select %p297, %s296, 1
        %s299 = smul.addr %s298, 8
        %s300 = scalar_lea.vmem %s4, %s299
        %p301 = pneg %p183
        %p302 = pneg %p180
        %s303 = smul.u32 2, %s24
        %p304 = scmp.lt.s32.totalorder %s303, 1
        %s305 = scalar_select %p304, %s303, 1
        %s306 = smul.addr %s305, 8
        %s307 = scalar_lea.vmem %s5, %s306
        %s308 = smul.u32 2, %s24
        %p309 = scmp.lt.s32.totalorder %s308, 1
        %s310 = scalar_select %p309, %s308, 1
        %s311 = smul.addr %s310, 4
        %s312 = scalar_lea.vmem %s0, %s311
        %s313 = smul.u32 2, %s24
        %s314 = smul.u32 2, %s25
        %s315 = smul.u32 2, %s24
        %p316 = scmp.lt.s32.totalorder %s315, 1
        %s317 = scalar_select %p316, %s315, 1
        %s318 = smul.addr %s317, 8
        %s319 = scalar_lea.vmem %s2, %s318
        %s320 = smul.u32 2, %s24
        %s321 = smul.u32 2, %s24
        %p322 = scmp.lt.s32.totalorder %s321, 1
        %s323 = scalar_select %p322, %s321, 1
        %s324 = smul.addr %s323, 8
        %s325 = scalar_lea.vmem %s3, %s324
        %s326 = smul.u32 2, %s24
        %s327 = smul.u32 2, %s24
        %p328 = scmp.lt.s32.totalorder %s327, 1
        %s329 = scalar_select %p328, %s327, 1
        %s330 = smul.addr %s329, 8
        %s331 = scalar_lea.vmem %s4, %s330
        %s332 = smul.u32 2, %s24
        %s333 = smul.u32 2, %s24
        %p334 = scmp.lt.s32.totalorder %s333, 1
        %s335 = scalar_select %p334, %s333, 1
        %s336 = smul.addr %s335, 8
        %s337 = scalar_lea.vmem %s5, %s336
        %s338 = smul.u32 2, %s24
        %p340 = scmp.eq.s32.totalorder %s25, 0
        // Predicated region
        $region41: #{tpu_custom_call.1} parent=35 // pred_check
          %p341 = pneg %p340
        $region42: #{tpu_custom_call.1} parent=35 // pred_check_branch
          %343 = sbr.rel (%p341) target = $region44
        $region43: #{tpu_custom_call.1} parent=35 // pred_region
          %vm344 = vcmask 7168
          %345 = vst.msk [vmem:[#allocation2] sm:$0xff] %vm344, -inf
          %346 = vst.msk [vmem:[#allocation2 + $0x8] sm:$0xff] %vm344, -inf
          %347 = vst.msk [vmem:[#allocation3] sm:$0xff] %vm344, 0.0
          %348 = vst.msk [vmem:[#allocation3 + $0x8] sm:$0xff] %vm344, 0.0
        $region44: #{tpu_custom_call.1} parent=35 // pred_fallthru
          _
        %v349 = vld [vmem:[%s312] sm:$0xf]
        %v350 = vld [vmem:[%s312 + $0x4] sm:$0xf]
        %v351 = vld [vmem:[%s261] sm:$0xff]
        %v352 = vld [vmem:[%s261 + $0x8] sm:$0xff]
        %v353 = vld [vmem:[%s261 + $0x10] sm:$0xff]
        %v354 = vld [vmem:[%s261 + $0x18] sm:$0xff]
        %v357 = vunpack.c.l.b16 %v349
        %v358 = vunpack.c.l.b16 %v350
        %v359 = vpack.c.b16 %v358, %v357
        %v364 = vunpack.c.l.b16 %v351
        %v365 = vunpack.c.h.b16 %v351
        %v366 = vunpack.c.l.b16 %v352
        %v367 = vunpack.c.h.b16 %v352
        %v368 = vunpack.c.l.b16 %v353
        %v369 = vunpack.c.h.b16 %v353
        %v370 = vunpack.c.l.b16 %v354
        %v371 = vunpack.c.h.b16 %v354
        %v372 = vpack.c.b16 %v366, %v364
        %v373 = vpack.c.b16 %v367, %v365
        %v374 = vpack.c.b16 %v370, %v368
        %v375 = vpack.c.b16 %v371, %v369
        %vm380 = vcmask 261120
        %v382 = vsel %vm380, %v359, 0
        %384 = vmatprep.subr.bf16.mxu0 %v373
        %385 = vmatpush1.bf16.msra.mxu0 %v372
        %386 = vmatprep.subr.bf16.mxu0 %v375
        %387 = vmatpush1.bf16.msra.mxu0 %v374
        %388 = vmatprep.subr.bf16.mxu0 0
        %389 = vmatpush1.bf16.msra.mxu0 0
        %390 = vmatprep.subr.bf16.mxu0 0
        %391 = vmatpush1.bf16.msra.mxu0 0
        %392 = vmatprep.subr.bf16.mxu0 0
        %393 = vmatpush1.bf16.msra.mxu0 0
        %394 = vmatprep.subr.bf16.mxu0 0
        %395 = vmatpush1.bf16.msra.mxu0 0
        %396 = vmatprep.subr.bf16.mxu0 0
        %397 = vmatpush1.bf16.msra.mxu0 0
        %398 = vmatprep.subr.bf16.mxu0 0
        %399 = vmatpush1.bf16.msra.mxu0 0
        %400 = vmatprep.subr.bf16.mxu0 0
        %401 = vmatpush1.bf16.msra.mxu0 0
        %402 = vmatprep.subr.bf16.mxu0 0
        %403 = vmatpush1.bf16.msra.mxu0 0
        %404 = vmatprep.subr.bf16.mxu0 0
        %405 = vmatpush1.bf16.msra.mxu0 0
        %406 = vmatprep.subr.bf16.mxu0 0
        %407 = vmatpush1.bf16.msra.mxu0 0
        %408 = vmatprep.subr.bf16.mxu0 0
        %409 = vmatpush1.bf16.msra.mxu0 0
        %410 = vmatprep.subr.bf16.mxu0 0
        %411 = vmatpush1.bf16.msra.mxu0 0
        %412 = vmatprep.subr.bf16.mxu0 0
        %413 = vmatpush1.bf16.msra.mxu0 0
        %414 = vmatprep.subr.bf16.mxu0 0
        %415 = vmatpush1.bf16.msra.mxu0 0
        %416 = vmatprep.mubr.bf16.mxu0 0
        %417 = vmatmul.mubr.bf16.gmra.mrb[0].mxu0 %v382
        %v418 = vpop.f32.mrb[0].mxu0
        %v419 = vadd.f32 0.0, %v418
        %v420 = vpop.f32.mrb[0].mxu0
        %v421 = vadd.f32 0.0, %v420
        %v422 = vpop.f32.mrb[0].mxu0
        %v423 = vadd.f32 0.0, %v422
        %v424 = vpop.f32.mrb[0].mxu0
        %v425 = vadd.f32 0.0, %v424
        %426 = vdwg.mxu0
        %v427 = vld [vmem:[#allocation2] sm:$0xff]
        %v428 = vld [vmem:[#allocation2 + $0x8] sm:$0xff]
        %v429 = vmax.f32 %v419, %v421
        %430 = vmax.xlane.f32.xlu0 %v429
        %v431 = vpop.xlane.xlu0 %430
        %v432 = vmax.f32 %v423, %v425
        %433 = vmax.xlane.f32.xlu0 %v432
        %v434 = vpop.xlane.xlu0 %433
        %v435 = vmax.f32 %v427, %v431
        %v436 = vmax.f32 %v428, %v434
        %v437 = vsub.f32 %v427, %v435
        %v438 = vsub.f32 %v428, %v436
        %v439 = vmul.f32 %v437, 1.442695
        %v440 = vpow.pop %v439
        %v441 = vmul.f32 %v438, 1.442695
        %v442 = vpow.pop %v441
        %v443 = vld [vmem:[#allocation3] sm:$0xff]
        %v444 = vld [vmem:[#allocation3 + $0x8] sm:$0xff]
        %v445 = vmul.f32 %v440, %v443
        %v446 = vmul.f32 %v442, %v444
        %448 = vset.pattern.permute.xlu0 0
        %449 = vperm.xlu0 %448, %v435
        %v450 = vpop.permute.xlu0 %449
        %453 = vset.pattern.permute.xlu0 0
        %454 = vperm.xlu0 %453, %v436
        %v455 = vpop.permute.xlu0 %454
        %v457 = vsub.f32 %v419, %v450
        %v458 = vsub.f32 %v421, %v450
        %v459 = vsub.f32 %v423, %v455
        %v460 = vsub.f32 %v425, %v455
        %v461 = vmul.f32 %v457, 1.442695
        %v462 = vpow.pop %v461
        %v463 = vmul.f32 %v458, 1.442695
        %v464 = vpow.pop %v463
        %v465 = vmul.f32 %v459, 1.442695
        %v466 = vpow.pop %v465
        %v467 = vmul.f32 %v460, 1.442695
        %v468 = vpow.pop %v467
        %v469 = vadd.f32 %v462, %v464
        %470 = vadd.xlane.f32.xlu0 %v469
        %v471 = vpop.xlane.xlu0 %470
        %v472 = vadd.f32 %v466, %v468
        %473 = vadd.xlane.f32.xlu0 %v472
        %v474 = vpop.xlane.xlu0 %473
        %v475 = vadd.f32 %v445, %v471
        %v476 = vadd.f32 %v446, %v474
        %vm477 = vcmask 7168
        %478 = vst.msk [vmem:[#allocation3] sm:$0xff] %vm477, %v475
        %479 = vst.msk [vmem:[#allocation3 + $0x8] sm:$0xff] %vm477, %v476
        %480 = vst.msk [vmem:[#allocation2] sm:$0xff] %vm477, %v435
        %481 = vst.msk [vmem:[#allocation2 + $0x8] sm:$0xff] %vm477, %v436
        %p482 = scmp.eq.s32.totalorder %s25, 1
        // Predicated region
        $region45: #{tpu_custom_call.1} parent=35 // pred_check
          %p483 = pneg %p482
        $region46: #{tpu_custom_call.1} parent=35 // pred_check_branch
          %485 = sbr.rel (%p483) target = $region48
        $region47: #{tpu_custom_call.1} parent=35 // pred_region
          %v486 = vld [vmem:[#allocation2] sm:$0xff]
          %v487 = vld [vmem:[#allocation2 + $0x8] sm:$0xff]
          %v488 = vld [vmem:[#allocation3] sm:$0xff]
          %v489 = vld [vmem:[#allocation3 + $0x8] sm:$0xff]
          %v490 = vlog2.pop %v488
          %v491 = vmul.f32 %v490, 0.6931472
          %v492 = vlog2.pop %v489
          %v493 = vmul.f32 %v492, 0.6931472
          %v494 = vadd.f32 %v486, %v491
          %v495 = vadd.f32 %v487, %v493
          %496 = vst.msk [vmem:[%s337] sm:$0xff] %vm477, %v494
          %497 = vst.msk [vmem:[%s337 + $0x8] sm:$0xff] %vm477, %v495
          %v498 = vld [vmem:[%s325] sm:$0xff]
          %v499 = vld [vmem:[%s325 + $0x8] sm:$0xff]
          %v500 = vsub.f32 %v494, %v498
          %v501 = vsub.f32 %v495, %v499
          %v502 = vld [vmem:[%s319] sm:$0xff]
          %v503 = vld [vmem:[%s319 + $0x8] sm:$0xff]
          %vm504 = vcmp.eq.s32.totalorder %v502, 0
          %vm505 = vcmp.eq.s32.totalorder %v503, 0
          %v506 = vsel %vm504, 0.0, %v500
          %v507 = vsel %vm505, 0.0, %v501
          %508 = vst.msk [vmem:[%s331] sm:$0xff] %vm477, %v506
          %509 = vst.msk [vmem:[%s331 + $0x8] sm:$0xff] %vm477, %v507
        $region48: #{tpu_custom_call.1} parent=35 // pred_fallthru
          _
        %s510 = smul.u32 2, %s24
        %p511 = scmp.lt.s32.totalorder %s510, 1
        %s512 = scalar_select %p511, %s510, 1
        %s513 = smul.addr %s512, 8
        %s514 = scalar_lea.vmem %s4, %s513
        %s515 = smul.u32 2, %s24
        %p516 = scmp.lt.s32.totalorder %s515, 1
        %s517 = scalar_select %p516, %s515, 1
        %s518 = smul.addr %s517, 8
        %s519 = scalar_lea.vmem %s5, %s518
        // Predicated region
        $region49: #{tpu_custom_call.1} parent=35 // pred_check
          %p520 = pneg %p154
        $region50: #{tpu_custom_call.1} parent=35 // pred_check_branch
          %522 = sbr.rel (%p520) target = $region52
        $region51: #{tpu_custom_call.1} parent=35 // pred_region
          %s523 = smul.u32 2, %s24
        $region52: #{tpu_custom_call.1} parent=35 // pred_fallthru
          _
        // Predicated region
        $region53: #{tpu_custom_call.1} parent=35 // pred_check
          %p524 = pneg %p180
        $region54: #{tpu_custom_call.1} parent=35 // pred_check_branch
          %526 = sbr.rel (%p524) target = $region56
        $region55: #{tpu_custom_call.1} parent=35 // pred_region
          %s527 = smul.u32 2, %s24
        $region56: #{tpu_custom_call.1} parent=35 // pred_fallthru
          _
        // Predicated region
        $region57: #{tpu_custom_call.1} parent=35 // pred_check
          %p528 = pneg %p154
        $region58: #{tpu_custom_call.1} parent=35 // pred_check_branch
          %530 = sbr.rel (%p528) target = $region60
        $region59: #{tpu_custom_call.1} parent=35 // pred_region
          %s531 = smul.u32 2, %s24
          %p532 = scmp.lt.s32.totalorder %s531, 1
          %s533 = scalar_select %p532, %s531, 1
          %s534 = smul.addr %s533, 8
          %s535 = scalar_lea.vmem %s4, %s534
        $region60: #{tpu_custom_call.1} parent=35 // pred_fallthru
          _
        // Predicated region
        $region61: #{tpu_custom_call.1} parent=35 // pred_check
          %p536 = pneg %p180
        $region62: #{tpu_custom_call.1} parent=35 // pred_check_branch
          %538 = sbr.rel (%p536) target = $region64
        $region63: #{tpu_custom_call.1} parent=35 // pred_region
          %s539 = smul.u32 2, %s24
          %p540 = scmp.lt.s32.totalorder %s539, 1
          %s541 = scalar_select %p540, %s539, 1
          %s542 = smul.addr %s541, 8
          %s543 = scalar_lea.vmem %s5, %s542
        $region64: #{tpu_custom_call.1} parent=35 // pred_fallthru
          _
      $region36: #{tpu_custom_call.1} parent=5 // pred_fallthru
        _
      %p544 = scmp.le.s32.totalorder 2, %s15
      // Predicated region
      $region65: #{tpu_custom_call.1} parent=5 // pred_check
        %p545 = pneg %p544
      $region66: #{tpu_custom_call.1} parent=5 // pred_check_branch
        %547 = sbr.rel (%p545) target = $region68
      $region67: #{tpu_custom_call.1} parent=5 // pred_region
        %s548 = ssub.s32 %s15, 2
      $region68: #{tpu_custom_call.1} parent=5 // pred_fallthru
        _
    $region6: #{tpu_custom_call.1} parent=1 // loop_footer
      %s19 = sadd.s32 1, %s15
    $region7: #{tpu_custom_call.1} parent=1 // loop_footer_branch
      %14 = sbr.rel target = $region3
    $region8: #{tpu_custom_call.1} parent=1 // loop_exit
      _
    %549 = vsyncpa [#allocation5], 1
    %s550 = scalar_lea.sflag [#allocation5], 1
    %551 = vsyncpa %s550, 1

</llo_original>
